<compile_context>
chip_gen: v7x
topology: tpu7x:2x2x1
jax: 0.10.0
libtpu: 0.0.40
codegen_flags: <defaults>
</compile_context>

<pallas_src>
import functools

import jax
import jax.numpy as jnp
from jax.experimental import pallas as pl
from jax.experimental.pallas import tpu as pltpu

_LANE = 128


def _bce_partial_kernel(*refs, weights, n_heads):
    """One grid step = one row tile.  Loops all heads in-kernel and writes a
    lane-dense weighted partial sum of the (un-normalized) BCE."""
    pred_refs = refs[:n_heads]
    label_ref = refs[n_heads]
    out_ref = refs[n_heads + 1]          # block shape (1, 1, LANE)

    y = label_ref[...].astype(jnp.float32)          # (TILE_R, LANE)
    one_minus_y = 1.0 - y

    acc = jnp.zeros((1, y.shape[-1]), jnp.float32)  # lane-dense partial sum
    for h in range(n_heads):                        # static unroll (7 heads)
        p = pred_refs[h][...].astype(jnp.float32)
        # PyTorch's binary_cross_entropy clamps log terms at -100.
        log_p = jnp.maximum(jnp.log(p), -100.0)
        log_1mp = jnp.maximum(jnp.log(1.0 - p), -100.0)
        bce = -(y * log_p + one_minus_y * log_1mp)
        acc = acc + weights[h] * jnp.sum(bce, axis=0, keepdims=True)

    out_ref[...] = acc[None]                        # (1, 1, LANE)


def _pick_row_tile(rows, target=1024):
    """Largest row tile <= target that divides rows and is a multiple of 8
    (or the full slab if rows is already small)."""
    if rows <= target:
        return rows
    for t in range(target, 7, -8):
        if rows % t == 0:
            return t
    return rows  # fallback: full slab (correct, just less pipelined)


def final_loss(preds, label, weights=(1.0,) * 7):
    """preds: list of arrays, all same shape as label (e.g. NCHW). Scalar out."""
    n_heads = len(preds)
    n_elem = label.size
    assert n_elem % _LANE == 0, "example sized so total elements divide 128"
    rows = n_elem // _LANE
    tile_r = _pick_row_tile(rows)
    num_tiles = rows // tile_r

    # Flatten to lane-dense 2D slabs, keep native dtype (kernel upcasts).
    preds2d = [p.reshape(rows, _LANE) for p in preds]
    label2d = label.reshape(rows, _LANE)

    # Effective per-head weights, reproducing the original indexing:
    #   head 0 -> weights[0]; head k (k>=1) -> weights[k-1]
    w_eff = tuple(float(w) for w in
                  [weights[0]] + [weights[i] for i in range(n_heads - 1)])

    kernel = functools.partial(_bce_partial_kernel, weights=w_eff,
                               n_heads=n_heads)

    tile_spec = pl.BlockSpec((tile_r, _LANE), lambda r: (r, 0))

    partials = pl.pallas_call(
        kernel,
        out_shape=jax.ShapeDtypeStruct((num_tiles, 1, _LANE), jnp.float32),
        grid=(num_tiles,),
        in_specs=[tile_spec] * n_heads + [tile_spec],   # preds..., label
        out_specs=pl.BlockSpec((1, 1, _LANE), lambda r: (r, 0, 0)),
        compiler_params=pltpu.CompilerParams(
            # Each row tile writes its own output block -> safe to shard
            # across TensorCores on v7x.
            dimension_semantics=("parallel",)
        ),
    )(*preds2d, label2d)

    # Final tiny cross-tile / cross-lane reduce + mean normalization.
    return jnp.sum(partials) * (1.0 / float(n_elem))


if __name__ == "__main__":
    key = jax.random.PRNGKey(0)
    B, C, H, W = 2, 4, 16, 16
    n_heads = 7

    keys = jax.random.split(key, n_heads + 1)
    # Predictions in (0, 1) like sigmoid outputs.
    preds = [
        jax.nn.sigmoid(jax.random.normal(keys[i], (B, C, H, W), dtype=jnp.float32))
        for i in range(n_heads)
    ]
    # Binary-ish targets in [0, 1].
    label = jax.random.uniform(keys[-1], (B, C, H, W), dtype=jnp.float32)

    loss = final_loss(preds, label)
    jax.block_until_ready(loss)

    # Sanity check against a pure-JAX reference of the same math.
    def bce_ref(p, y):
        lp = jnp.maximum(jnp.log(p), -100.0)
        l1 = jnp.maximum(jnp.log(1.0 - p), -100.0)
        return jnp.mean(-(y * lp + (1.0 - y) * l1))

    w = [1.0] * 7
    ref = w[0] * bce_ref(preds[0], label)
    for i, x in enumerate(preds[1:]):
        ref = ref + w[i] * bce_ref(x, label)

    assert jnp.allclose(loss, ref, rtol=1e-5, atol=1e-5), (loss, ref)
    print("KERNEL_OK")
</pallas_src>

<mosaic_0001>
module attributes {stable_mosaic.version = 11 : i64} {
  func.func @_bce_partial_kernel(%arg0: i32, %arg1: memref<16x128xf32, #tpu.memory_space<vmem>>, %arg2: memref<16x128xf32, #tpu.memory_space<vmem>>, %arg3: memref<16x128xf32, #tpu.memory_space<vmem>>, %arg4: memref<16x128xf32, #tpu.memory_space<vmem>>, %arg5: memref<16x128xf32, #tpu.memory_space<vmem>>, %arg6: memref<16x128xf32, #tpu.memory_space<vmem>>, %arg7: memref<16x128xf32, #tpu.memory_space<vmem>>, %arg8: memref<16x128xf32, #tpu.memory_space<vmem>>, %arg9: memref<1x1x128xf32, #tpu.memory_space<vmem>>) attributes {dimension_semantics = [#tpu.dimension_semantics<parallel>], iteration_bounds = array<i64: 1>, scalar_prefetch = 0 : i64, scratch_operands = 0 : i64, tpu.core_type = #tpu.core_type<tc>, window_params = [{transform_indices = @transform_0, window_bounds = array<i64: 16, 128>}, {transform_indices = @transform_1, window_bounds = array<i64: 16, 128>}, {transform_indices = @transform_2, window_bounds = array<i64: 16, 128>}, {transform_indices = @transform_3, window_bounds = array<i64: 16, 128>}, {transform_indices = @transform_4, window_bounds = array<i64: 16, 128>}, {transform_indices = @transform_5, window_bounds = array<i64: 16, 128>}, {transform_indices = @transform_6, window_bounds = array<i64: 16, 128>}, {transform_indices = @transform_7, window_bounds = array<i64: 16, 128>}, {transform_indices = @transform_8, window_bounds = array<i64: 1, 1, 128>}]} {
    %c0 = arith.constant 0 : index
    %c0_0 = arith.constant 0 : index
    %0 = vector.load %arg8[%c0, %c0_0] : memref<16x128xf32, #tpu.memory_space<vmem>>, vector<16x128xf32>
    %cst = arith.constant 1.000000e+00 : f32
    %1 = vector.broadcast %cst : f32 to vector<16x128xf32>
    %2 = arith.subf %1, %0 : vector<16x128xf32>
    %cst_1 = arith.constant 0.000000e+00 : f32
    %3 = vector.broadcast %cst_1 : f32 to vector<1x128xf32>
    %c0_2 = arith.constant 0 : index
    %c0_3 = arith.constant 0 : index
    %4 = vector.load %arg1[%c0_2, %c0_3] : memref<16x128xf32, #tpu.memory_space<vmem>>, vector<16x128xf32>
    %5 = math.log %4 : vector<16x128xf32>
    %cst_4 = arith.constant -1.000000e+02 : f32
    %6 = vector.broadcast %cst_4 : f32 to vector<16x128xf32>
    %7 = arith.maximumf %5, %6 : vector<16x128xf32>
    %cst_5 = arith.constant 1.000000e+00 : f32
    %8 = vector.broadcast %cst_5 : f32 to vector<16x128xf32>
    %9 = arith.subf %8, %4 : vector<16x128xf32>
    %10 = math.log %9 : vector<16x128xf32>
    %cst_6 = arith.constant -1.000000e+02 : f32
    %11 = vector.broadcast %cst_6 : f32 to vector<16x128xf32>
    %12 = arith.maximumf %10, %11 : vector<16x128xf32>
    %13 = arith.mulf %0, %7 : vector<16x128xf32>
    %14 = arith.mulf %2, %12 : vector<16x128xf32>
    %15 = arith.addf %13, %14 : vector<16x128xf32>
    %cst_7 = arith.constant 0.000000e+00 : f32
    %16 = vector.broadcast %cst_7 : f32 to vector<16x128xf32>
    %17 = arith.subf %16, %15 : vector<16x128xf32>
    %cst_8 = arith.constant dense<0.000000e+00> : vector<128xf32>
    %18 = vector.multi_reduction <add>, %17, %cst_8 [0] : vector<16x128xf32> to vector<128xf32>
    %19 = vector.shape_cast %18 : vector<128xf32> to vector<1x128xf32>
    %cst_9 = arith.constant 1.000000e+00 : f32
    %20 = vector.broadcast %cst_9 : f32 to vector<1x128xf32>
    %21 = arith.mulf %20, %19 : vector<1x128xf32>
    %22 = arith.addf %3, %21 : vector<1x128xf32>
    %c0_10 = arith.constant 0 : index
    %c0_11 = arith.constant 0 : index
    %23 = vector.load %arg2[%c0_10, %c0_11] : memref<16x128xf32, #tpu.memory_space<vmem>>, vector<16x128xf32>
    %24 = math.log %23 : vector<16x128xf32>
    %cst_12 = arith.constant -1.000000e+02 : f32
    %25 = vector.broadcast %cst_12 : f32 to vector<16x128xf32>
    %26 = arith.maximumf %24, %25 : vector<16x128xf32>
    %cst_13 = arith.constant 1.000000e+00 : f32
    %27 = vector.broadcast %cst_13 : f32 to vector<16x128xf32>
    %28 = arith.subf %27, %23 : vector<16x128xf32>
    %29 = math.log %28 : vector<16x128xf32>
    %cst_14 = arith.constant -1.000000e+02 : f32
    %30 = vector.broadcast %cst_14 : f32 to vector<16x128xf32>
    %31 = arith.maximumf %29, %30 : vector<16x128xf32>
    %32 = arith.mulf %0, %26 : vector<16x128xf32>
    %33 = arith.mulf %2, %31 : vector<16x128xf32>
    %34 = arith.addf %32, %33 : vector<16x128xf32>
    %cst_15 = arith.constant 0.000000e+00 : f32
    %35 = vector.broadcast %cst_15 : f32 to vector<16x128xf32>
    %36 = arith.subf %35, %34 : vector<16x128xf32>
    %cst_16 = arith.constant dense<0.000000e+00> : vector<128xf32>
    %37 = vector.multi_reduction <add>, %36, %cst_16 [0] : vector<16x128xf32> to vector<128xf32>
    %38 = vector.shape_cast %37 : vector<128xf32> to vector<1x128xf32>
    %cst_17 = arith.constant 1.000000e+00 : f32
    %39 = vector.broadcast %cst_17 : f32 to vector<1x128xf32>
    %40 = arith.mulf %39, %38 : vector<1x128xf32>
    %41 = arith.addf %22, %40 : vector<1x128xf32>
    %c0_18 = arith.constant 0 : index
    %c0_19 = arith.constant 0 : index
    %42 = vector.load %arg3[%c0_18, %c0_19] : memref<16x128xf32, #tpu.memory_space<vmem>>, vector<16x128xf32>
    %43 = math.log %42 : vector<16x128xf32>
    %cst_20 = arith.constant -1.000000e+02 : f32
    %44 = vector.broadcast %cst_20 : f32 to vector<16x128xf32>
    %45 = arith.maximumf %43, %44 : vector<16x128xf32>
    %cst_21 = arith.constant 1.000000e+00 : f32
    %46 = vector.broadcast %cst_21 : f32 to vector<16x128xf32>
    %47 = arith.subf %46, %42 : vector<16x128xf32>
    %48 = math.log %47 : vector<16x128xf32>
    %cst_22 = arith.constant -1.000000e+02 : f32
    %49 = vector.broadcast %cst_22 : f32 to vector<16x128xf32>
    %50 = arith.maximumf %48, %49 : vector<16x128xf32>
    %51 = arith.mulf %0, %45 : vector<16x128xf32>
    %52 = arith.mulf %2, %50 : vector<16x128xf32>
    %53 = arith.addf %51, %52 : vector<16x128xf32>
    %cst_23 = arith.constant 0.000000e+00 : f32
    %54 = vector.broadcast %cst_23 : f32 to vector<16x128xf32>
    %55 = arith.subf %54, %53 : vector<16x128xf32>
    %cst_24 = arith.constant dense<0.000000e+00> : vector<128xf32>
    %56 = vector.multi_reduction <add>, %55, %cst_24 [0] : vector<16x128xf32> to vector<128xf32>
    %57 = vector.shape_cast %56 : vector<128xf32> to vector<1x128xf32>
    %cst_25 = arith.constant 1.000000e+00 : f32
    %58 = vector.broadcast %cst_25 : f32 to vector<1x128xf32>
    %59 = arith.mulf %58, %57 : vector<1x128xf32>
    %60 = arith.addf %41, %59 : vector<1x128xf32>
    %c0_26 = arith.constant 0 : index
    %c0_27 = arith.constant 0 : index
    %61 = vector.load %arg4[%c0_26, %c0_27] : memref<16x128xf32, #tpu.memory_space<vmem>>, vector<16x128xf32>
    %62 = math.log %61 : vector<16x128xf32>
    %cst_28 = arith.constant -1.000000e+02 : f32
    %63 = vector.broadcast %cst_28 : f32 to vector<16x128xf32>
    %64 = arith.maximumf %62, %63 : vector<16x128xf32>
    %cst_29 = arith.constant 1.000000e+00 : f32
    %65 = vector.broadcast %cst_29 : f32 to vector<16x128xf32>
    %66 = arith.subf %65, %61 : vector<16x128xf32>
    %67 = math.log %66 : vector<16x128xf32>
    %cst_30 = arith.constant -1.000000e+02 : f32
    %68 = vector.broadcast %cst_30 : f32 to vector<16x128xf32>
    %69 = arith.maximumf %67, %68 : vector<16x128xf32>
    %70 = arith.mulf %0, %64 : vector<16x128xf32>
    %71 = arith.mulf %2, %69 : vector<16x128xf32>
    %72 = arith.addf %70, %71 : vector<16x128xf32>
    %cst_31 = arith.constant 0.000000e+00 : f32
    %73 = vector.broadcast %cst_31 : f32 to vector<16x128xf32>
    %74 = arith.subf %73, %72 : vector<16x128xf32>
    %cst_32 = arith.constant dense<0.000000e+00> : vector<128xf32>
    %75 = vector.multi_reduction <add>, %74, %cst_32 [0] : vector<16x128xf32> to vector<128xf32>
    %76 = vector.shape_cast %75 : vector<128xf32> to vector<1x128xf32>
    %cst_33 = arith.constant 1.000000e+00 : f32
    %77 = vector.broadcast %cst_33 : f32 to vector<1x128xf32>
    %78 = arith.mulf %77, %76 : vector<1x128xf32>
    %79 = arith.addf %60, %78 : vector<1x128xf32>
    %c0_34 = arith.constant 0 : index
    %c0_35 = arith.constant 0 : index
    %80 = vector.load %arg5[%c0_34, %c0_35] : memref<16x128xf32, #tpu.memory_space<vmem>>, vector<16x128xf32>
    %81 = math.log %80 : vector<16x128xf32>
    %cst_36 = arith.constant -1.000000e+02 : f32
    %82 = vector.broadcast %cst_36 : f32 to vector<16x128xf32>
    %83 = arith.maximumf %81, %82 : vector<16x128xf32>
    %cst_37 = arith.constant 1.000000e+00 : f32
    %84 = vector.broadcast %cst_37 : f32 to vector<16x128xf32>
    %85 = arith.subf %84, %80 : vector<16x128xf32>
    %86 = math.log %85 : vector<16x128xf32>
    %cst_38 = arith.constant -1.000000e+02 : f32
    %87 = vector.broadcast %cst_38 : f32 to vector<16x128xf32>
    %88 = arith.maximumf %86, %87 : vector<16x128xf32>
    %89 = arith.mulf %0, %83 : vector<16x128xf32>
    %90 = arith.mulf %2, %88 : vector<16x128xf32>
    %91 = arith.addf %89, %90 : vector<16x128xf32>
    %cst_39 = arith.constant 0.000000e+00 : f32
    %92 = vector.broadcast %cst_39 : f32 to vector<16x128xf32>
    %93 = arith.subf %92, %91 : vector<16x128xf32>
    %cst_40 = arith.constant dense<0.000000e+00> : vector<128xf32>
    %94 = vector.multi_reduction <add>, %93, %cst_40 [0] : vector<16x128xf32> to vector<128xf32>
    %95 = vector.shape_cast %94 : vector<128xf32> to vector<1x128xf32>
    %cst_41 = arith.constant 1.000000e+00 : f32
    %96 = vector.broadcast %cst_41 : f32 to vector<1x128xf32>
    %97 = arith.mulf %96, %95 : vector<1x128xf32>
    %98 = arith.addf %79, %97 : vector<1x128xf32>
    %c0_42 = arith.constant 0 : index
    %c0_43 = arith.constant 0 : index
    %99 = vector.load %arg6[%c0_42, %c0_43] : memref<16x128xf32, #tpu.memory_space<vmem>>, vector<16x128xf32>
    %100 = math.log %99 : vector<16x128xf32>
    %cst_44 = arith.constant -1.000000e+02 : f32
    %101 = vector.broadcast %cst_44 : f32 to vector<16x128xf32>
    %102 = arith.maximumf %100, %101 : vector<16x128xf32>
    %cst_45 = arith.constant 1.000000e+00 : f32
    %103 = vector.broadcast %cst_45 : f32 to vector<16x128xf32>
    %104 = arith.subf %103, %99 : vector<16x128xf32>
    %105 = math.log %104 : vector<16x128xf32>
    %cst_46 = arith.constant -1.000000e+02 : f32
    %106 = vector.broadcast %cst_46 : f32 to vector<16x128xf32>
    %107 = arith.maximumf %105, %106 : vector<16x128xf32>
    %108 = arith.mulf %0, %102 : vector<16x128xf32>
    %109 = arith.mulf %2, %107 : vector<16x128xf32>
    %110 = arith.addf %108, %109 : vector<16x128xf32>
    %cst_47 = arith.constant 0.000000e+00 : f32
    %111 = vector.broadcast %cst_47 : f32 to vector<16x128xf32>
    %112 = arith.subf %111, %110 : vector<16x128xf32>
    %cst_48 = arith.constant dense<0.000000e+00> : vector<128xf32>
    %113 = vector.multi_reduction <add>, %112, %cst_48 [0] : vector<16x128xf32> to vector<128xf32>
    %114 = vector.shape_cast %113 : vector<128xf32> to vector<1x128xf32>
    %cst_49 = arith.constant 1.000000e+00 : f32
    %115 = vector.broadcast %cst_49 : f32 to vector<1x128xf32>
    %116 = arith.mulf %115, %114 : vector<1x128xf32>
    %117 = arith.addf %98, %116 : vector<1x128xf32>
    %c0_50 = arith.constant 0 : index
    %c0_51 = arith.constant 0 : index
    %118 = vector.load %arg7[%c0_50, %c0_51] : memref<16x128xf32, #tpu.memory_space<vmem>>, vector<16x128xf32>
    %119 = math.log %118 : vector<16x128xf32>
    %cst_52 = arith.constant -1.000000e+02 : f32
    %120 = vector.broadcast %cst_52 : f32 to vector<16x128xf32>
    %121 = arith.maximumf %119, %120 : vector<16x128xf32>
    %cst_53 = arith.constant 1.000000e+00 : f32
    %122 = vector.broadcast %cst_53 : f32 to vector<16x128xf32>
    %123 = arith.subf %122, %118 : vector<16x128xf32>
    %124 = math.log %123 : vector<16x128xf32>
    %cst_54 = arith.constant -1.000000e+02 : f32
    %125 = vector.broadcast %cst_54 : f32 to vector<16x128xf32>
    %126 = arith.maximumf %124, %125 : vector<16x128xf32>
    %127 = arith.mulf %0, %121 : vector<16x128xf32>
    %128 = arith.mulf %2, %126 : vector<16x128xf32>
    %129 = arith.addf %127, %128 : vector<16x128xf32>
    %cst_55 = arith.constant 0.000000e+00 : f32
    %130 = vector.broadcast %cst_55 : f32 to vector<16x128xf32>
    %131 = arith.subf %130, %129 : vector<16x128xf32>
    %cst_56 = arith.constant dense<0.000000e+00> : vector<128xf32>
    %132 = vector.multi_reduction <add>, %131, %cst_56 [0] : vector<16x128xf32> to vector<128xf32>
    %133 = vector.shape_cast %132 : vector<128xf32> to vector<1x128xf32>
    %cst_57 = arith.constant 1.000000e+00 : f32
    %134 = vector.broadcast %cst_57 : f32 to vector<1x128xf32>
    %135 = arith.mulf %134, %133 : vector<1x128xf32>
    %136 = arith.addf %117, %135 : vector<1x128xf32>
    %137 = vector.shape_cast %136 : vector<1x128xf32> to vector<1x1x128xf32>
    %c0_58 = arith.constant 0 : index
    %c0_59 = arith.constant 0 : index
    %c0_60 = arith.constant 0 : index
    %138 = vector.load %arg9[%c0_58, %c0_59, %c0_60] : memref<1x1x128xf32, #tpu.memory_space<vmem>>, vector<1x1x128xf32>
    tpu.vector_store %arg9[%c0_58, %c0_59, %c0_60], %137 {strides = array<i32>} : memref<1x1x128xf32, #tpu.memory_space<vmem>>, vector<1x1x128xf32>,
    return
  }
  func.func @transform_0(%arg0: i32) -> (i32, i32) {
    %c0_i32 = arith.constant 0 : i32
    %c0_i32_0 = arith.constant 0 : i32
    return %arg0, %c0_i32 : i32, i32
  }
  func.func @transform_1(%arg0: i32) -> (i32, i32) {
    %c0_i32 = arith.constant 0 : i32
    %c0_i32_0 = arith.constant 0 : i32
    return %arg0, %c0_i32 : i32, i32
  }
  func.func @transform_2(%arg0: i32) -> (i32, i32) {
    %c0_i32 = arith.constant 0 : i32
    %c0_i32_0 = arith.constant 0 : i32
    return %arg0, %c0_i32 : i32, i32
  }
  func.func @transform_3(%arg0: i32) -> (i32, i32) {
    %c0_i32 = arith.constant 0 : i32
    %c0_i32_0 = arith.constant 0 : i32
    return %arg0, %c0_i32 : i32, i32
  }
  func.func @transform_4(%arg0: i32) -> (i32, i32) {
    %c0_i32 = arith.constant 0 : i32
    %c0_i32_0 = arith.constant 0 : i32
    return %arg0, %c0_i32 : i32, i32
  }
  func.func @transform_5(%arg0: i32) -> (i32, i32) {
    %c0_i32 = arith.constant 0 : i32
    %c0_i32_0 = arith.constant 0 : i32
    return %arg0, %c0_i32 : i32, i32
  }
  func.func @transform_6(%arg0: i32) -> (i32, i32) {
    %c0_i32 = arith.constant 0 : i32
    %c0_i32_0 = arith.constant 0 : i32
    return %arg0, %c0_i32 : i32, i32
  }
  func.func @transform_7(%arg0: i32) -> (i32, i32) {
    %c0_i32 = arith.constant 0 : i32
    %c0_i32_0 = arith.constant 0 : i32
    return %arg0, %c0_i32 : i32, i32
  }
  func.func @transform_8(%arg0: i32) -> (i32, i32, i32) {
    %c0_i32 = arith.constant 0 : i32
    %c0_i32_0 = arith.constant 0 : i32
    %c0_i32_1 = arith.constant 0 : i32
    return %arg0, %c0_i32, %c0_i32_0 : i32, i32, i32
  }
}

</mosaic_0001>

<llo_original>
// kernel: tpu_custom_call.1
$region0: #{tpu_custom_call.1}
  #allocation0 [shape = 'u32[]', space=smem, size = 0x4, offset = 0x4, fixed_abs, tag = 'smem constant byte address 0x4 - core index']
  #allocation1 [shape = 'u32[144,128]{1,0:T(1,128)}', space=vmem, size = 0x12000, scoped, tag = 'internal scratch']
  %s0 = inlined_call_operand.hbm [shape: f32[16,128], index: 0, kind: input, shape index: {}]
  %s1 = inlined_call_operand.hbm [shape: f32[16,128], index: 1, kind: input, shape index: {}]
  %s2 = inlined_call_operand.hbm [shape: f32[16,128], index: 2, kind: input, shape index: {}]
  %s3 = inlined_call_operand.hbm [shape: f32[16,128], index: 3, kind: input, shape index: {}]
  %s4 = inlined_call_operand.hbm [shape: f32[16,128], index: 4, kind: input, shape index: {}]
  %s5 = inlined_call_operand.vmem [shape: f32[16,128], index: 5, kind: input, shape index: {}]
  %s6 = inlined_call_operand.hbm [shape: f32[16,128], index: 6, kind: input, shape index: {}]
  %s7 = inlined_call_operand.hbm [shape: f32[16,128], index: 7, kind: input, shape index: {}]
  %s8 = inlined_call_operand.hbm [shape: f32[1,1,128], index: 8, kind: output, shape index: {}]
  %s9 = sld [smem:[#allocation0]]
  $region70: #{tpu_custom_call.1} parent=0
    _
  %s11 = ssub.s32 1, %s9
  %s12 = scalar_select 0, %s11, %s9
  $region1: #{tpu_custom_call.1} parent=0
    #allocation2 [shape = 'u8[8192]{0}', space=vmem, size = 0x2000, scoped, tag = 'input window, operand 0, single buffered']
    #allocation3 [shape = 's32[1]{0}', space=sflag, size = 0x4, scoped, tag = 'scoped memory for tpu_custom_call.1']
    #allocation4 [shape = 's32[1]{0}', space=sflag, size = 0x4, scoped, tag = 'scoped memory for tpu_custom_call.1']
    #allocation5 [shape = 'u8[8192]{0}', space=vmem, size = 0x2000, scoped, tag = 'input window, operand 1, single buffered']
    #allocation6 [shape = 's32[1]{0}', space=sflag, size = 0x4, scoped, tag = 'scoped memory for tpu_custom_call.1']
    #allocation7 [shape = 'u8[8192]{0}', space=vmem, size = 0x2000, scoped, tag = 'input window, operand 2, single buffered']
    #allocation8 [shape = 'u8[8192]{0}', space=vmem, size = 0x2000, scoped, tag = 'input window, operand 3, single buffered']
    #allocation9 [shape = 's32[1]{0}', space=sflag, size = 0x4, scoped, tag = 'scoped memory for tpu_custom_call.1']
    #allocation10 [shape = 'u8[8192]{0}', space=vmem, size = 0x2000, scoped, tag = 'input window, operand 4, single buffered']
    #allocation11 [shape = 'u8[8192]{0}', space=vmem, size = 0x2000, scoped, tag = 'input window, operand 6, single buffered']
    #allocation12 [shape = 's32[1]{0}', space=sflag, size = 0x4, scoped, tag = 'scoped memory for tpu_custom_call.1']
    #allocation13 [shape = 'u8[8192]{0}', space=vmem, size = 0x2000, scoped, tag = 'input window, operand 7, single buffered']
    #allocation14 [shape = 'u8[512]{0}', space=vmem, size = 0x400, scoped, tag = 'output window, operand 0, single buffered']
    %13 = vsyncpa [#allocation3], 0
    %14 = vsyncpa [#allocation6], 0
    %15 = vsyncpa [#allocation9], 0
    %16 = vsyncpa [#allocation12], 0
    %17 = vsyncpa [#allocation4], 0
    // Predicated region
    $region2: #{tpu_custom_call.1} parent=1 // pred_check
      _
    $region3: #{tpu_custom_call.1} parent=1 // pred_check_branch
      %19 = sbr.rel (0) target = $region5
    $region4: #{tpu_custom_call.1} parent=1 // pred_region
      %s21 = ssub.s32 256, 256
      %22 = vsyncadd [#allocation3], %s21
      %s23 = sshll.u32 [#allocation2], 4
      %s24 = int_to_ptr.vmem [resolvable:$true] %s23
      %29 = dma.hbm_to_vmem [thread:$0]  %s0, 256, %s24, [#allocation3], 128, 128, 8
    $region5: #{tpu_custom_call.1} parent=1 // pred_fallthru
      _
    // Predicated region
    $region6: #{tpu_custom_call.1} parent=1 // pred_check
      _
    $region7: #{tpu_custom_call.1} parent=1 // pred_check_branch
      %31 = sbr.rel (0) target = $region9
    $region8: #{tpu_custom_call.1} parent=1 // pred_region
      %s33 = ssub.s32 256, 256
      %34 = vsyncadd [#allocation6], %s33
      %s35 = sshll.u32 [#allocation5], 4
      %s36 = int_to_ptr.vmem [resolvable:$true] %s35
      %41 = dma.hbm_to_vmem [thread:$0]  %s1, 256, %s36, [#allocation6], 128, 128, 8
    $region9: #{tpu_custom_call.1} parent=1 // pred_fallthru
      _
    // Predicated region
    $region10: #{tpu_custom_call.1} parent=1 // pred_check
      _
    $region11: #{tpu_custom_call.1} parent=1 // pred_check_branch
      %43 = sbr.rel (0) target = $region13
    $region12: #{tpu_custom_call.1} parent=1 // pred_region
      %s45 = ssub.s32 256, 256
      %46 = vsyncadd [#allocation6], %s45
      %s47 = sshll.u32 [#allocation7], 4
      %s48 = int_to_ptr.vmem [resolvable:$true] %s47
      %53 = dma.hbm_to_vmem [thread:$0]  %s2, 256, %s48, [#allocation6], 128, 128, 8
    $region13: #{tpu_custom_call.1} parent=1 // pred_fallthru
      _
    // Predicated region
    $region14: #{tpu_custom_call.1} parent=1 // pred_check
      _
    $region15: #{tpu_custom_call.1} parent=1 // pred_check_branch
      %55 = sbr.rel (0) target = $region17
    $region16: #{tpu_custom_call.1} parent=1 // pred_region
      %s57 = ssub.s32 256, 256
      %58 = vsyncadd [#allocation9], %s57
      %s59 = sshll.u32 [#allocation8], 4
      %s60 = int_to_ptr.vmem [resolvable:$true] %s59
      %65 = dma.hbm_to_vmem [thread:$0]  %s3, 256, %s60, [#allocation9], 128, 128, 8
    $region17: #{tpu_custom_call.1} parent=1 // pred_fallthru
      _
    // Predicated region
    $region18: #{tpu_custom_call.1} parent=1 // pred_check
      _
    $region19: #{tpu_custom_call.1} parent=1 // pred_check_branch
      %67 = sbr.rel (0) target = $region21
    $region20: #{tpu_custom_call.1} parent=1 // pred_region
      %s69 = ssub.s32 256, 256
      %70 = vsyncadd [#allocation9], %s69
      %s71 = sshll.u32 [#allocation10], 4
      %s72 = int_to_ptr.vmem [resolvable:$true] %s71
      %77 = dma.hbm_to_vmem [thread:$0]  %s4, 256, %s72, [#allocation9], 128, 128, 8
    $region21: #{tpu_custom_call.1} parent=1 // pred_fallthru
      _
    // Predicated region
    $region22: #{tpu_custom_call.1} parent=1 // pred_check
      _
    $region23: #{tpu_custom_call.1} parent=1 // pred_check_branch
      %79 = sbr.rel (0) target = $region25
    $region24: #{tpu_custom_call.1} parent=1 // pred_region
      _
    $region25: #{tpu_custom_call.1} parent=1 // pred_fallthru
      _
    // Predicated region
    $region26: #{tpu_custom_call.1} parent=1 // pred_check
      _
    $region27: #{tpu_custom_call.1} parent=1 // pred_check_branch
      %81 = sbr.rel (0) target = $region29
    $region28: #{tpu_custom_call.1} parent=1 // pred_region
      %s83 = ssub.s32 256, 256
      %84 = vsyncadd [#allocation12], %s83
      %s85 = sshll.u32 [#allocation11], 4
      %s86 = int_to_ptr.vmem [resolvable:$true] %s85
      %91 = dma.hbm_to_vmem [thread:$0]  %s6, 256, %s86, [#allocation12], 128, 128, 8
    $region29: #{tpu_custom_call.1} parent=1 // pred_fallthru
      _
    // Predicated region
    $region30: #{tpu_custom_call.1} parent=1 // pred_check
      _
    $region31: #{tpu_custom_call.1} parent=1 // pred_check_branch
      %93 = sbr.rel (0) target = $region33
    $region32: #{tpu_custom_call.1} parent=1 // pred_region
      %s95 = ssub.s32 256, 256
      %96 = vsyncadd [#allocation12], %s95
      %s97 = sshll.u32 [#allocation13], 4
      %s98 = int_to_ptr.vmem [resolvable:$true] %s97
      %103 = dma.hbm_to_vmem [thread:$0]  %s7, 256, %s98, [#allocation12], 128, 128, 8
    $region33: #{tpu_custom_call.1} parent=1 // pred_fallthru
      _
    // Predicated region
    $region34: #{tpu_custom_call.1} parent=1 // pred_check
      _
    $region35: #{tpu_custom_call.1} parent=1 // pred_check_branch
      %105 = sbr.rel (0) target = $region37
    $region36: #{tpu_custom_call.1} parent=1 // pred_region
      %106 = dma.done [#allocation3], 256
    $region37: #{tpu_custom_call.1} parent=1 // pred_fallthru
      _
    // Predicated region
    $region38: #{tpu_custom_call.1} parent=1 // pred_check
      _
    $region39: #{tpu_custom_call.1} parent=1 // pred_check_branch
      %108 = sbr.rel (0) target = $region41
    $region40: #{tpu_custom_call.1} parent=1 // pred_region
      %109 = dma.done [#allocation6], 256
    $region41: #{tpu_custom_call.1} parent=1 // pred_fallthru
      _
    // Predicated region
    $region42: #{tpu_custom_call.1} parent=1 // pred_check
      _
    $region43: #{tpu_custom_call.1} parent=1 // pred_check_branch
      %111 = sbr.rel (0) target = $region45
    $region44: #{tpu_custom_call.1} parent=1 // pred_region
      %112 = dma.done [#allocation6], 256
    $region45: #{tpu_custom_call.1} parent=1 // pred_fallthru
      _
    // Predicated region
    $region46: #{tpu_custom_call.1} parent=1 // pred_check
      _
    $region47: #{tpu_custom_call.1} parent=1 // pred_check_branch
      %114 = sbr.rel (0) target = $region49
    $region48: #{tpu_custom_call.1} parent=1 // pred_region
      %115 = dma.done [#allocation9], 256
    $region49: #{tpu_custom_call.1} parent=1 // pred_fallthru
      _
    // Predicated region
    $region50: #{tpu_custom_call.1} parent=1 // pred_check
      _
    $region51: #{tpu_custom_call.1} parent=1 // pred_check_branch
      %117 = sbr.rel (0) target = $region53
    $region52: #{tpu_custom_call.1} parent=1 // pred_region
      %118 = dma.done [#allocation9], 256
    $region53: #{tpu_custom_call.1} parent=1 // pred_fallthru
      _
    // Predicated region
    $region54: #{tpu_custom_call.1} parent=1 // pred_check
      _
    $region55: #{tpu_custom_call.1} parent=1 // pred_check_branch
      %120 = sbr.rel (0) target = $region57
    $region56: #{tpu_custom_call.1} parent=1 // pred_region
      %121 = dma.done [#allocation12], 256
    $region57: #{tpu_custom_call.1} parent=1 // pred_fallthru
      _
    // Predicated region
    $region58: #{tpu_custom_call.1} parent=1 // pred_check
      _
    $region59: #{tpu_custom_call.1} parent=1 // pred_check_branch
      %123 = sbr.rel (0) target = $region61
    $region60: #{tpu_custom_call.1} parent=1 // pred_region
      %124 = dma.done [#allocation12], 256
    $region61: #{tpu_custom_call.1} parent=1 // pred_fallthru
      _
    %v125 = vld [vmem:[#allocation13] sm:$0xff]
    %v126 = vld [vmem:[#allocation13 + $0x8] sm:$0xff]
    %v127 = vsub.f32 1.0, %v125
    %v128 = vsub.f32 1.0, %v126
    %v129 = vld [vmem:[#allocation2] sm:$0xff]
    %v130 = vld [vmem:[#allocation2 + $0x8] sm:$0xff]
    %v131 = vlog2.pop %v129
    %v132 = vmul.f32 %v131, 0.6931472
    %v133 = vlog2.pop %v130
    %v134 = vmul.f32 %v133, 0.6931472
    %v135 = vmax.f32 %v132, -100.0
    %v136 = vmax.f32 %v134, -100.0
    %v137 = vsub.f32 1.0, %v129
    %v138 = vsub.f32 1.0, %v130
    %v139 = vlog2.pop %v137
    %v140 = vmul.f32 %v139, 0.6931472
    %v141 = vlog2.pop %v138
    %v142 = vmul.f32 %v141, 0.6931472
    %v143 = vmax.f32 %v140, -100.0
    %v144 = vmax.f32 %v142, -100.0
    %v145 = vmul.f32 %v125, %v135
    %v146 = vmul.f32 %v126, %v136
    %v147 = vmul.f32 %v127, %v143
    %v148 = vmul.f32 %v128, %v144
    %v149 = vadd.f32 %v145, %v147
    %v150 = vadd.f32 %v146, %v148
    %v151 = vsub.f32 0.0, %v149
    %v152 = vsub.f32 0.0, %v150
    %v153 = vadd.f32 %v151, %v152
    %v154 = vrot.slane %v153, 4
    %v155 = vadd.f32 %v153, %v154
    %v156 = vrot.slane %v155, 2
    %v157 = vadd.f32 %v155, %v156
    %v158 = vrot.slane %v157, 1
    %v159 = vadd.f32 %v157, %v158
    %v160 = vadd.f32 %v159, 0.0
    %v161 = vld [vmem:[#allocation5] sm:$0xff]
    %v162 = vld [vmem:[#allocation5 + $0x8] sm:$0xff]
    %v163 = vlog2.pop %v161
    %v164 = vmul.f32 %v163, 0.6931472
    %v165 = vlog2.pop %v162
    %v166 = vmul.f32 %v165, 0.6931472
    %v167 = vmax.f32 %v164, -100.0
    %v168 = vmax.f32 %v166, -100.0
    %v169 = vsub.f32 1.0, %v161
    %v170 = vsub.f32 1.0, %v162
    %v171 = vlog2.pop %v169
    %v172 = vmul.f32 %v171, 0.6931472
    %v173 = vlog2.pop %v170
    %v174 = vmul.f32 %v173, 0.6931472
    %v175 = vmax.f32 %v172, -100.0
    %v176 = vmax.f32 %v174, -100.0
    %v177 = vmul.f32 %v125, %v167
    %v178 = vmul.f32 %v126, %v168
    %v179 = vmul.f32 %v127, %v175
    %v180 = vmul.f32 %v128, %v176
    %v181 = vadd.f32 %v177, %v179
    %v182 = vadd.f32 %v178, %v180
    %v183 = vsub.f32 0.0, %v181
    %v184 = vsub.f32 0.0, %v182
    %v185 = vadd.f32 %v183, %v184
    %v186 = vrot.slane %v185, 4
    %v187 = vadd.f32 %v185, %v186
    %v188 = vrot.slane %v187, 2
    %v189 = vadd.f32 %v187, %v188
    %v190 = vrot.slane %v189, 1
    %v191 = vadd.f32 %v189, %v190
    %v192 = vadd.f32 %v160, %v191
    %v193 = vld [vmem:[#allocation7] sm:$0xff]
    %v194 = vld [vmem:[#allocation7 + $0x8] sm:$0xff]
    %v195 = vlog2.pop %v193
    %v196 = vmul.f32 %v195, 0.6931472
    %v197 = vlog2.pop %v194
    %v198 = vmul.f32 %v197, 0.6931472
    %v199 = vmax.f32 %v196, -100.0
    %v200 = vmax.f32 %v198, -100.0
    %v201 = vsub.f32 1.0, %v193
    %v202 = vsub.f32 1.0, %v194
    %v203 = vlog2.pop %v201
    %v204 = vmul.f32 %v203, 0.6931472
    %v205 = vlog2.pop %v202
    %v206 = vmul.f32 %v205, 0.6931472
    %v207 = vmax.f32 %v204, -100.0
    %v208 = vmax.f32 %v206, -100.0
    %v209 = vmul.f32 %v125, %v199
    %v210 = vmul.f32 %v126, %v200
    %v211 = vmul.f32 %v127, %v207
    %v212 = vmul.f32 %v128, %v208
    %v213 = vadd.f32 %v209, %v211
    %v214 = vadd.f32 %v210, %v212
    %v215 = vsub.f32 0.0, %v213
    %v216 = vsub.f32 0.0, %v214
    %v217 = vadd.f32 %v215, %v216
    %v218 = vrot.slane %v217, 4
    %v219 = vadd.f32 %v217, %v218
    %v220 = vrot.slane %v219, 2
    %v221 = vadd.f32 %v219, %v220
    %v222 = vrot.slane %v221, 1
    %v223 = vadd.f32 %v221, %v222
    %v224 = vadd.f32 %v192, %v223
    %v225 = vld [vmem:[#allocation8] sm:$0xff]
    %v226 = vld [vmem:[#allocation8 + $0x8] sm:$0xff]
    %v227 = vlog2.pop %v225
    %v228 = vmul.f32 %v227, 0.6931472
    %v229 = vlog2.pop %v226
    %v230 = vmul.f32 %v229, 0.6931472
    %v231 = vmax.f32 %v228, -100.0
    %v232 = vmax.f32 %v230, -100.0
    %v233 = vsub.f32 1.0, %v225
    %v234 = vsub.f32 1.0, %v226
    %v235 = vlog2.pop %v233
    %v236 = vmul.f32 %v235, 0.6931472
    %v237 = vlog2.pop %v234
    %v238 = vmul.f32 %v237, 0.6931472
    %v239 = vmax.f32 %v236, -100.0
    %v240 = vmax.f32 %v238, -100.0
    %v241 = vmul.f32 %v125, %v231
    %v242 = vmul.f32 %v126, %v232
    %v243 = vmul.f32 %v127, %v239
    %v244 = vmul.f32 %v128, %v240
    %v245 = vadd.f32 %v241, %v243
    %v246 = vadd.f32 %v242, %v244
    %v247 = vsub.f32 0.0, %v245
    %v248 = vsub.f32 0.0, %v246
    %v249 = vadd.f32 %v247, %v248
    %v250 = vrot.slane %v249, 4
    %v251 = vadd.f32 %v249, %v250
    %v252 = vrot.slane %v251, 2
    %v253 = vadd.f32 %v251, %v252
    %v254 = vrot.slane %v253, 1
    %v255 = vadd.f32 %v253, %v254
    %v256 = vadd.f32 %v224, %v255
    %v257 = vld [vmem:[#allocation10] sm:$0xff]
    %v258 = vld [vmem:[#allocation10 + $0x8] sm:$0xff]
    %v259 = vlog2.pop %v257
    %v260 = vmul.f32 %v259, 0.6931472
    %v261 = vlog2.pop %v258
    %v262 = vmul.f32 %v261, 0.6931472
    %v263 = vmax.f32 %v260, -100.0
    %v264 = vmax.f32 %v262, -100.0
    %v265 = vsub.f32 1.0, %v257
    %v266 = vsub.f32 1.0, %v258
    %v267 = vlog2.pop %v265
    %v268 = vmul.f32 %v267, 0.6931472
    %v269 = vlog2.pop %v266
    %v270 = vmul.f32 %v269, 0.6931472
    %v271 = vmax.f32 %v268, -100.0
    %v272 = vmax.f32 %v270, -100.0
    %v273 = vmul.f32 %v125, %v263
    %v274 = vmul.f32 %v126, %v264
    %v275 = vmul.f32 %v127, %v271
    %v276 = vmul.f32 %v128, %v272
    %v277 = vadd.f32 %v273, %v275
    %v278 = vadd.f32 %v274, %v276
    %v279 = vsub.f32 0.0, %v277
    %v280 = vsub.f32 0.0, %v278
    %v281 = vadd.f32 %v279, %v280
    %v282 = vrot.slane %v281, 4
    %v283 = vadd.f32 %v281, %v282
    %v284 = vrot.slane %v283, 2
    %v285 = vadd.f32 %v283, %v284
    %v286 = vrot.slane %v285, 1
    %v287 = vadd.f32 %v285, %v286
    %v288 = vadd.f32 %v256, %v287
    %v289 = vld [vmem:[%s5] sm:$0xff]
    %v290 = vld [vmem:[%s5 + $0x8] sm:$0xff]
    %v291 = vlog2.pop %v289
    %v292 = vmul.f32 %v291, 0.6931472
    %v293 = vlog2.pop %v290
    %v294 = vmul.f32 %v293, 0.6931472
    %v295 = vmax.f32 %v292, -100.0
    %v296 = vmax.f32 %v294, -100.0
    %v297 = vsub.f32 1.0, %v289
    %v298 = vsub.f32 1.0, %v290
    %v299 = vlog2.pop %v297
    %v300 = vmul.f32 %v299, 0.6931472
    %v301 = vlog2.pop %v298
    %v302 = vmul.f32 %v301, 0.6931472
    %v303 = vmax.f32 %v300, -100.0
    %v304 = vmax.f32 %v302, -100.0
    %v305 = vmul.f32 %v125, %v295
    %v306 = vmul.f32 %v126, %v296
    %v307 = vmul.f32 %v127, %v303
    %v308 = vmul.f32 %v128, %v304
    %v309 = vadd.f32 %v305, %v307
    %v310 = vadd.f32 %v306, %v308
    %v311 = vsub.f32 0.0, %v309
    %v312 = vsub.f32 0.0, %v310
    %v313 = vadd.f32 %v311, %v312
    %v314 = vrot.slane %v313, 4
    %v315 = vadd.f32 %v313, %v314
    %v316 = vrot.slane %v315, 2
    %v317 = vadd.f32 %v315, %v316
    %v318 = vrot.slane %v317, 1
    %v319 = vadd.f32 %v317, %v318
    %v320 = vadd.f32 %v288, %v319
    %v321 = vld [vmem:[#allocation11] sm:$0xff]
    %v322 = vld [vmem:[#allocation11 + $0x8] sm:$0xff]
    %v323 = vlog2.pop %v321
    %v324 = vmul.f32 %v323, 0.6931472
    %v325 = vlog2.pop %v322
    %v326 = vmul.f32 %v325, 0.6931472
    %v327 = vmax.f32 %v324, -100.0
    %v328 = vmax.f32 %v326, -100.0
    %v329 = vsub.f32 1.0, %v321
    %v330 = vsub.f32 1.0, %v322
    %v331 = vlog2.pop %v329
    %v332 = vmul.f32 %v331, 0.6931472
    %v333 = vlog2.pop %v330
    %v334 = vmul.f32 %v333, 0.6931472
    %v335 = vmax.f32 %v332, -100.0
    %v336 = vmax.f32 %v334, -100.0
    %v337 = vmul.f32 %v125, %v327
    %v338 = vmul.f32 %v126, %v328
    %v339 = vmul.f32 %v127, %v335
    %v340 = vmul.f32 %v128, %v336
    %v341 = vadd.f32 %v337, %v339
    %v342 = vadd.f32 %v338, %v340
    %v343 = vsub.f32 0.0, %v341
    %v344 = vsub.f32 0.0, %v342
    %v345 = vadd.f32 %v343, %v344
    %v346 = vrot.slane %v345, 4
    %v347 = vadd.f32 %v345, %v346
    %v348 = vrot.slane %v347, 2
    %v349 = vadd.f32 %v347, %v348
    %v350 = vrot.slane %v349, 1
    %v351 = vadd.f32 %v349, %v350
    %v352 = vadd.f32 %v320, %v351
    %353 = vst [vmem:[#allocation14] sm:$0x1] %v352
    // Predicated region
    $region62: #{tpu_custom_call.1} parent=1 // pred_check
      _
    $region63: #{tpu_custom_call.1} parent=1 // pred_check_branch
      %355 = sbr.rel (0) target = $region65
    $region64: #{tpu_custom_call.1} parent=1 // pred_region
      %s357 = ssub.s32 16, 16
      %358 = vsyncadd [#allocation4], %s357
      %s360 = sshll.u32 [#allocation14], 4
      %s361 = int_to_ptr.vmem [resolvable:$true] %s360
      %363 = dma.vmem_to_hbm [thread:$0]  %s361, 16, %s8, [#allocation4]
    $region65: #{tpu_custom_call.1} parent=1 // pred_fallthru
      _
    // Predicated region
    $region66: #{tpu_custom_call.1} parent=1 // pred_check
      _
    $region67: #{tpu_custom_call.1} parent=1 // pred_check_branch
      %365 = sbr.rel (0) target = $region69
    $region68: #{tpu_custom_call.1} parent=1 // pred_region
      %366 = dma.done [#allocation4], 16
    $region69: #{tpu_custom_call.1} parent=1 // pred_fallthru
      _
    %367 = vsyncpa [#allocation3], 1
    %368 = vsyncpa [#allocation6], 1
    %369 = vsyncpa [#allocation9], 1
    %370 = vsyncpa [#allocation12], 1
    %371 = vsyncpa [#allocation4], 1

</llo_original>
